<compile_context>
chip_gen: v7x
topology: tpu7x:2x2x1
jax: 0.10.0
libtpu: 0.0.40
codegen_flags: <defaults>
</compile_context>

<pallas_src>
import functools

import jax
import jax.numpy as jnp
import numpy as np
from jax.experimental import pallas as pl
from jax.experimental.pallas import tpu as pltpu


# ---------------------------------------------------------------------------
# Tiling helper: largest multiple of `unit` that divides `extent` and is
# <= target; full extent (always a legal block shape) if extent % unit != 0.
# ---------------------------------------------------------------------------
def _largest_divisor_tile(extent, unit, target):
    if extent % unit != 0:
        return extent
    target = max(target, unit)
    best = unit
    k_max = extent // unit
    for k in range(1, k_max + 1):
        if k_max % k == 0 and k * unit <= target:
            best = k * unit
    return best


# ---------------------------------------------------------------------------
# Pass 1: per-row partial moments, lane-dense accumulation, deferred reduce.
#   acc_ref layout (row_tile, 3*half):
#     [:,       0:  half] += partial sums of x        (per 128-lane slot)
#     [:,    half:2*half] += partial sums of x*x
#     [:,  2*half:3*half] += partial sums of (x - p)^2   (p = per-row pivot)
# ---------------------------------------------------------------------------
def _moments_kernel(x_ref, piv_ref, acc_ref, *, n_chunks, half):
    @pl.when(pl.program_id(1) == 0)
    def _init():
        acc_ref[...] = jnp.zeros_like(acc_ref)

    p = piv_ref[...]  # (row_tile, 1) f32

    if n_chunks is None:
        # Fallback (lane extent not a multiple of 128): single full-lane block.
        x = x_ref[...].astype(jnp.float32)
        d = x - p
        s = jnp.sum(x, axis=-1, keepdims=True)
        q = jnp.sum(x * x, axis=-1, keepdims=True)
        w = jnp.sum(d * d, axis=-1, keepdims=True)
    else:
        rows_blk = x_ref.shape[0]
        s = jnp.zeros((rows_blk, half), jnp.float32)
        q = jnp.zeros((rows_blk, half), jnp.float32)
        w = jnp.zeros((rows_blk, half), jnp.float32)
        for j in range(n_chunks):  # static unroll; pure lane-aligned VPU adds
            c = x_ref[:, j * half:(j + 1) * half].astype(jnp.float32)
            d = c - p
            s = s + c
            q = q + c * c
            w = w + d * d

    acc_ref[:, 0:half] += s
    acc_ref[:, half:2 * half] += q
    acc_ref[:, 2 * half:3 * half] += w


# ---------------------------------------------------------------------------
# Pass 2: y = x * scale_row + shift_row (scale/shift packed as (rows, 2)).
# ---------------------------------------------------------------------------
def _normalize_kernel(x_ref, ss_ref, o_ref):
    scale = ss_ref[:, 0:1]
    shift = ss_ref[:, 1:2]
    o_ref[...] = (x_ref[...].astype(jnp.float32) * scale + shift).astype(o_ref.dtype)


def image_auto_running_mean_and_var(x, running_mean, running_var, running_count,
                                    *, block_budget_bytes=4 * 1024 * 1024):
    """Forward pass of ImageAutoRunningMeanAndVar (training mode).

    Args:
      x:             (N, C, H, W)
      running_mean:  (1, C, 1, 1) float32
      running_var:   (1, C, 1, 1) float32
      running_count: ()           float32
    Returns:
      (y, new_mean, new_var, new_count) matching the torch module's buffers.
    """
    n, c, h, w = x.shape
    dt = x.dtype
    itemsize = jnp.dtype(dt).itemsize
    sublane = max(8, 32 // itemsize)  # f32: 8, bf16: 16, int8/fp8: 32

    # --- choose a lane-dense 2-D view (both are free reshapes of NCHW) -------
    if n * c < sublane and h > 1 and w % 128 == 0:
        rows, lanes, fold_h = n * c * h, w, True
    else:
        rows, lanes, fold_h = n * c, h * w, False
    x_rows = x.reshape(rows, lanes)  # no astype here: cast per-tile in-kernel

    # --- tile selection -------------------------------------------------------
    col_tile = _largest_divisor_tile(lanes, 128, target=min(lanes, 8192))
    row_target = max(sublane, block_budget_bytes // max(col_tile * itemsize, 1))
    row_tile = _largest_divisor_tile(rows, sublane, target=row_target)
    n_row_blocks = rows // row_tile
    n_col_blocks = lanes // col_tile

    chunked = (col_tile % 128 == 0)
    n_chunks = (col_tile // 128) if chunked else None
    half = 128 if chunked else 1
    acc_w = 3 * half

    block_bytes = row_tile * col_tile * 4
    vmem_limit = int(max(48 << 20, min(100 << 20, 6 * block_bytes + (2 << 20))))

    # --- per-row constants ----------------------------------------------------
    mean_c = running_mean.reshape(c).astype(jnp.float32)
    var_c = running_var.reshape(c).astype(jnp.float32)
    count = jnp.asarray(running_count, jnp.float32)

    def _per_row(vals_c):  # (C,) -> (rows, 1), matching the chosen view
        if fold_h:
            v = jnp.broadcast_to(vals_c[None, :, None], (n, c, h))
        else:
            v = jnp.broadcast_to(vals_c[None, :], (n, c))
        return v.reshape(rows, 1)

    pivot_rows = _per_row(mean_c)

    # --- Pass 1: moments -------------------------------------------------------
    acc = pl.pallas_call(
        functools.partial(_moments_kernel, n_chunks=n_chunks, half=half),
        out_shape=jax.ShapeDtypeStruct((rows, acc_w), jnp.float32),
        grid=(n_row_blocks, n_col_blocks),
        in_specs=[
            pl.BlockSpec((row_tile, col_tile), lambda r, k: (r, k)),
            pl.BlockSpec((row_tile, 1), lambda r, k: (r, 0)),
        ],
        out_specs=pl.BlockSpec((row_tile, acc_w), lambda r, k: (r, 0)),
        compiler_params=pltpu.CompilerParams(
            dimension_semantics=("parallel", "arbitrary"),
            vmem_limit_bytes=vmem_limit,
        ),
    )(x_rows, pivot_rows)

    # --- Tiny O(C) finalize: deferred reduce, *255 branch, Welford merge -------
    row_sum = acc[:, 0:half].sum(axis=-1)
    row_sumsq = acc[:, half:2 * half].sum(axis=-1)
    row_piv = acc[:, 2 * half:3 * half].sum(axis=-1)

    if fold_h:
        rshape, raxes = (n, c, h), (0, 2)
    else:
        rshape, raxes = (n, c), (0,)
    ch_sum = row_sum.reshape(rshape).sum(axis=raxes)      # (C,)
    ch_sumsq = row_sumsq.reshape(rshape).sum(axis=raxes)  # (C,)
    ch_piv = row_piv.reshape(rshape).sum(axis=raxes)      # (C,)

    batch_count = jnp.float32(n * h * w)  # elements per channel

    # forward(): if x.size(1) == 3 and self._mean.mean() > 1.0 and x.mean() < 1.0:
    #                x = x * 255.0   (C == 3 is a static Python condition)
    if c == 3:
        x_mean_global = ch_sum.sum() / (batch_count * jnp.float32(c))
        take = jnp.logical_and(jnp.mean(mean_c) > 1.0, x_mean_global < 1.0)
        s255 = jnp.where(take, jnp.float32(255.0), jnp.float32(1.0))
    else:
        s255 = jnp.float32(1.0)

    ex = ch_sum / batch_count
    ex2 = ch_sumsq / batch_count
    epiv = ch_piv / batch_count
    dpiv = ex - mean_c
    # Two algebraically identical variance forms; pick the better conditioned.
    var_plain = ex2 - ex * ex
    var_pivot = epiv - dpiv * dpiv
    raw_var = jnp.maximum(jnp.where(dpiv * dpiv < ex * ex, var_pivot, var_plain), 0.0)

    batch_mean = s255 * ex                      # mean of (s * x)
    batch_var = (s255 * s255) * raw_var         # var of (s * x)

    # update_mean_var_count_from_moments
    delta = batch_mean - mean_c
    tot_count = count + batch_count
    m2 = (var_c * count + batch_var * batch_count
          + delta * delta * count * batch_count / tot_count)
    new_mean_c = mean_c + delta * batch_count / tot_count
    new_var_c = m2 / tot_count

    # (s*x - new_mean) / sqrt(max(new_var, 1e-4))  ==  x * scale + shift
    inv_std_c = 1.0 / jnp.sqrt(jnp.maximum(new_var_c, jnp.float32(1e-4)))
    ss_rows = jnp.concatenate(
        [_per_row(s255 * inv_std_c), _per_row(-new_mean_c * inv_std_c)], axis=-1)

    # --- Pass 2: streaming normalize -------------------------------------------
    y_rows = pl.pallas_call(
        _normalize_kernel,
        out_shape=jax.ShapeDtypeStruct((rows, lanes), dt),
        grid=(n_row_blocks, n_col_blocks),
        in_specs=[
            pl.BlockSpec((row_tile, col_tile), lambda r, k: (r, k)),
            pl.BlockSpec((row_tile, 2), lambda r, k: (r, 0)),
        ],
        out_specs=pl.BlockSpec((row_tile, col_tile), lambda r, k: (r, k)),
        compiler_params=pltpu.CompilerParams(
            dimension_semantics=("parallel", "parallel"),
            vmem_limit_bytes=vmem_limit,
        ),
        # TODO(synk): add input_output_aliases={0: 0} when the caller can donate x.
    )(x_rows, ss_rows)

    y = y_rows.reshape(n, c, h, w)  # free reshape back to NCHW
    return (y, new_mean_c.reshape(1, c, 1, 1), new_var_c.reshape(1, c, 1, 1),
            tot_count)


# ---------------------------------------------------------------------------
# Pure-JAX reference mirroring the PyTorch module (training mode).
# ---------------------------------------------------------------------------
def _reference(x, mean, var, count):
    n, c, h, w = x.shape
    xr = x
    if c == 3:
        cond = jnp.logical_and(jnp.mean(mean) > 1.0, jnp.mean(x) < 1.0)
        xr = jnp.where(cond, x * 255.0, x)
    batch_mean = jnp.mean(xr, axis=(0, 2, 3)).reshape(1, c, 1, 1)
    batch_count = jnp.float32(n * h * w)
    batch_var = jnp.mean((xr - batch_mean) ** 2, axis=(0, 2, 3)).reshape(1, c, 1, 1)
    delta = batch_mean - mean
    tot = count + batch_count
    m2 = var * count + batch_var * batch_count + delta ** 2 * count * batch_count / tot
    new_mean = mean + delta * batch_count / tot
    new_var = m2 / tot
    stdev = jnp.sqrt(jnp.maximum(new_var, 1e-4))
    return (xr - new_mean) / stdev, new_mean, new_var, tot


if __name__ == "__main__":
    key = jax.random.PRNGKey(0)
    k1, k2, k3, k4 = jax.random.split(key, 4)

    fwd = jax.jit(image_auto_running_mean_and_var)

    def _check(x, rm, rv, rc):
        outs = fwd(x, rm, rv, rc)
        jax.block_until_ready(outs)
        refs = _reference(x, rm, rv, rc)
        for got, ref in zip(outs, refs):
            assert np.allclose(np.asarray(got), np.asarray(ref),
                               rtol=1e-4, atol=1e-4)

    # Case 1: C != 3, zero-initialized running stats.
    x = jax.random.normal(k1, (2, 4, 16, 16), dtype=jnp.float32) * 2.0 + 0.5
    _check(x,
           jnp.zeros((1, 4, 1, 1), jnp.float32),
           jnp.zeros((1, 4, 1, 1), jnp.float32),
           jnp.zeros((), jnp.float32))

    # Case 2: C == 3, running mean > 1 and x in [0, 1) -> *255 branch taken.
    x2 = jax.random.uniform(k2, (2, 3, 16, 16), dtype=jnp.float32)
    _check(x2,
           jnp.full((1, 3, 1, 1), 2.0, jnp.float32),
           jnp.ones((1, 3, 1, 1), jnp.float32),
           jnp.asarray(10.0, jnp.float32))

    # Case 3: small N*C with W % 128 == 0 -> fold-H layout path (+255 branch).
    x3 = jax.random.uniform(k3, (2, 3, 8, 128), dtype=jnp.float32)
    _check(x3,
           jnp.full((1, 3, 1, 1), 2.0, jnp.float32),
           jnp.full((1, 3, 1, 1), 0.5, jnp.float32),
           jnp.asarray(4.0, jnp.float32))

    # Case 4: running mean ~ batch mean -> pivoted variance formula selected.
    x4 = jax.random.normal(k4, (2, 4, 16, 16), dtype=jnp.float32) * 0.5 + 10.0
    _check(x4,
           jnp.full((1, 4, 1, 1), 10.0, jnp.float32),
           jnp.full((1, 4, 1, 1), 0.3, jnp.float32),
           jnp.asarray(5.0, jnp.float32))

    print("KERNEL_OK")
</pallas_src>

<mosaic_0001>
module attributes {stable_mosaic.version = 11 : i64} {
  func.func @_moments_kernel(%arg0: i32, %arg1: i32, %arg2: memref<8x256xf32, #tpu.memory_space<vmem>>, %arg3: memref<8x1xf32, #tpu.memory_space<vmem>>, %arg4: memref<8x384xf32, #tpu.memory_space<vmem>>) attributes {dimension_semantics = [#tpu.dimension_semantics<parallel>, #tpu.dimension_semantics<arbitrary>], iteration_bounds = array<i64: 1, 1>, scalar_prefetch = 0 : i64, scratch_operands = 0 : i64, tpu.core_type = #tpu.core_type<tc>, window_params = [{transform_indices = @transform_0, window_bounds = array<i64: 8, 256>}, {transform_indices = @transform_1, window_bounds = array<i64: 8, 1>}, {transform_indices = @transform_2, window_bounds = array<i64: 8, 384>}]} {
    %c0_i32 = arith.constant 0 : i32
    %0 = arith.cmpi eq, %arg1, %c0_i32 : i32
    %1 = arith.extui %0 : i1 to i32
    %c0_i32_0 = arith.constant 0 : i32
    %2 = arith.cmpi ne, %1, %c0_i32_0 : i32
    scf.if %2 {
      %cst_18 = arith.constant 0.000000e+00 : f32
      %32 = vector.broadcast %cst_18 : f32 to vector<8x384xf32>
      %c0_19 = arith.constant 0 : index
      %c0_20 = arith.constant 0 : index
      %33 = vector.load %arg4[%c0_19, %c0_20] : memref<8x384xf32, #tpu.memory_space<vmem>>, vector<8x384xf32>
      tpu.vector_store %arg4[%c0_19, %c0_20], %32 {strides = array<i32>} : memref<8x384xf32, #tpu.memory_space<vmem>>, vector<8x384xf32>,
    } else {
    }
    %c0 = arith.constant 0 : index
    %c0_1 = arith.constant 0 : index
    %3 = vector.load %arg3[%c0, %c0_1] : memref<8x1xf32, #tpu.memory_space<vmem>>, vector<8x1xf32>
    %cst = arith.constant 0.000000e+00 : f32
    %4 = vector.broadcast %cst : f32 to vector<8x128xf32>
    %cst_2 = arith.constant 0.000000e+00 : f32
    %5 = vector.broadcast %cst_2 : f32 to vector<8x128xf32>
    %cst_3 = arith.constant 0.000000e+00 : f32
    %6 = vector.broadcast %cst_3 : f32 to vector<8x128xf32>
    %c0_4 = arith.constant 0 : index
    %c0_5 = arith.constant 0 : index
    %7 = vector.load %arg2[%c0_4, %c0_5] : memref<8x256xf32, #tpu.memory_space<vmem>>, vector<8x128xf32>
    %8 = vector.broadcast %3 : vector<8x1xf32> to vector<8x128xf32>
    %9 = arith.subf %7, %8 : vector<8x128xf32>
    %10 = arith.addf %4, %7 : vector<8x128xf32>
    %11 = arith.mulf %7, %7 : vector<8x128xf32>
    %12 = arith.addf %5, %11 : vector<8x128xf32>
    %13 = arith.mulf %9, %9 : vector<8x128xf32>
    %14 = arith.addf %6, %13 : vector<8x128xf32>
    %c0_6 = arith.constant 0 : index
    %c128 = arith.constant 128 : index
    %15 = vector.load %arg2[%c0_6, %c128] : memref<8x256xf32, #tpu.memory_space<vmem>>, vector<8x128xf32>
    %16 = vector.broadcast %3 : vector<8x1xf32> to vector<8x128xf32>
    %17 = arith.subf %15, %16 : vector<8x128xf32>
    %18 = arith.addf %10, %15 : vector<8x128xf32>
    %19 = arith.mulf %15, %15 : vector<8x128xf32>
    %20 = arith.addf %12, %19 : vector<8x128xf32>
    %21 = arith.mulf %17, %17 : vector<8x128xf32>
    %22 = arith.addf %14, %21 : vector<8x128xf32>
    %c0_7 = arith.constant 0 : index
    %c0_8 = arith.constant 0 : index
    %23 = vector.load %arg4[%c0_7, %c0_8] : memref<8x384xf32, #tpu.memory_space<vmem>>, vector<8x128xf32>
    %24 = arith.addf %23, %18 : vector<8x128xf32>
    %c0_9 = arith.constant 0 : index
    %c0_10 = arith.constant 0 : index
    %25 = vector.load %arg4[%c0_9, %c0_10] : memref<8x384xf32, #tpu.memory_space<vmem>>, vector<8x128xf32>
    tpu.vector_store %arg4[%c0_9, %c0_10], %24 {strides = array<i32>} : memref<8x384xf32, #tpu.memory_space<vmem>>, vector<8x128xf32>,
    %c0_11 = arith.constant 0 : index
    %c128_12 = arith.constant 128 : index
    %26 = vector.load %arg4[%c0_11, %c128_12] : memref<8x384xf32, #tpu.memory_space<vmem>>, vector<8x128xf32>
    %27 = arith.addf %26, %20 : vector<8x128xf32>
    %c0_13 = arith.constant 0 : index
    %c128_14 = arith.constant 128 : index
    %28 = vector.load %arg4[%c0_13, %c128_14] : memref<8x384xf32, #tpu.memory_space<vmem>>, vector<8x128xf32>
    tpu.vector_store %arg4[%c0_13, %c128_14], %27 {strides = array<i32>} : memref<8x384xf32, #tpu.memory_space<vmem>>, vector<8x128xf32>,
    %c0_15 = arith.constant 0 : index
    %c256 = arith.constant 256 : index
    %29 = vector.load %arg4[%c0_15, %c256] : memref<8x384xf32, #tpu.memory_space<vmem>>, vector<8x128xf32>
    %30 = arith.addf %29, %22 : vector<8x128xf32>
    %c0_16 = arith.constant 0 : index
    %c256_17 = arith.constant 256 : index
    %31 = vector.load %arg4[%c0_16, %c256_17] : memref<8x384xf32, #tpu.memory_space<vmem>>, vector<8x128xf32>
    tpu.vector_store %arg4[%c0_16, %c256_17], %30 {strides = array<i32>} : memref<8x384xf32, #tpu.memory_space<vmem>>, vector<8x128xf32>,
    return
  }
  func.func @transform_0(%arg0: i32, %arg1: i32) -> (i32, i32) {
    %c0_i32 = arith.constant 0 : i32
    return %arg0, %arg1 : i32, i32
  }
  func.func @transform_1(%arg0: i32, %arg1: i32) -> (i32, i32) {
    %c0_i32 = arith.constant 0 : i32
    %c0_i32_0 = arith.constant 0 : i32
    return %arg0, %c0_i32 : i32, i32
  }
  func.func @transform_2(%arg0: i32, %arg1: i32) -> (i32, i32) {
    %c0_i32 = arith.constant 0 : i32
    %c0_i32_0 = arith.constant 0 : i32
    return %arg0, %c0_i32 : i32, i32
  }
}

module attributes {stable_mosaic.version = 11 : i64} {
  func.func @_normalize_kernel(%arg0: i32, %arg1: i32, %arg2: memref<8x256xf32, #tpu.memory_space<vmem>>, %arg3: memref<8x2xf32, #tpu.memory_space<vmem>>, %arg4: memref<8x256xf32, #tpu.memory_space<vmem>>) attributes {dimension_semantics = [#tpu.dimension_semantics<parallel>, #tpu.dimension_semantics<parallel>], iteration_bounds = array<i64: 1, 1>, scalar_prefetch = 0 : i64, scratch_operands = 0 : i64, tpu.core_type = #tpu.core_type<tc>, window_params = [{transform_indices = @transform_0, window_bounds = array<i64: 8, 256>}, {transform_indices = @transform_1, window_bounds = array<i64: 8, 2>}, {transform_indices = @transform_2, window_bounds = array<i64: 8, 256>}]} {
    %c0 = arith.constant 0 : index
    %c0_0 = arith.constant 0 : index
    %0 = vector.load %arg3[%c0, %c0_0] : memref<8x2xf32, #tpu.memory_space<vmem>>, vector<8x1xf32>
    %c0_1 = arith.constant 0 : index
    %c1 = arith.constant 1 : index
    %1 = vector.load %arg3[%c0_1, %c1] : memref<8x2xf32, #tpu.memory_space<vmem>>, vector<8x1xf32>
    %c0_2 = arith.constant 0 : index
    %c0_3 = arith.constant 0 : index
    %2 = vector.load %arg2[%c0_2, %c0_3] : memref<8x256xf32, #tpu.memory_space<vmem>>, vector<8x256xf32>
    %3 = vector.broadcast %0 : vector<8x1xf32> to vector<8x256xf32>
    %4 = arith.mulf %2, %3 : vector<8x256xf32>
    %5 = vector.broadcast %1 : vector<8x1xf32> to vector<8x256xf32>
    %6 = arith.addf %4, %5 : vector<8x256xf32>
    %c0_4 = arith.constant 0 : index
    %c0_5 = arith.constant 0 : index
    %7 = vector.load %arg4[%c0_4, %c0_5] : memref<8x256xf32, #tpu.memory_space<vmem>>, vector<8x256xf32>
    tpu.vector_store %arg4[%c0_4, %c0_5], %6 {strides = array<i32>} : memref<8x256xf32, #tpu.memory_space<vmem>>, vector<8x256xf32>,
    return
  }
  func.func @transform_0(%arg0: i32, %arg1: i32) -> (i32, i32) {
    %c0_i32 = arith.constant 0 : i32
    return %arg0, %arg1 : i32, i32
  }
  func.func @transform_1(%arg0: i32, %arg1: i32) -> (i32, i32) {
    %c0_i32 = arith.constant 0 : i32
    %c0_i32_0 = arith.constant 0 : i32
    return %arg0, %c0_i32 : i32, i32
  }
  func.func @transform_2(%arg0: i32, %arg1: i32) -> (i32, i32) {
    %c0_i32 = arith.constant 0 : i32
    return %arg0, %arg1 : i32, i32
  }
}

</mosaic_0001>

<llo_original>
// kernel: image_auto_running_mean_and_var.3
$region0: #{image_auto_running_mean_and_var.3}
  #allocation0 [shape = 'u32[]', space=smem, size = 0x4, offset = 0x4, fixed_abs, tag = 'smem constant byte address 0x4 - core index']
  #allocation1 [shape = 'u32[144,128]{1,0:T(1,128)}', space=vmem, size = 0x12000, scoped, tag = 'internal scratch']
  %s0 = inlined_call_operand.vmem [shape: f32[8,256], index: 0, kind: input, shape index: {}]
  %s1 = inlined_call_operand.vmem [shape: f32[8,2], index: 1, kind: input, shape index: {}]
  %s2 = inlined_call_operand.vmem [shape: f32[8,256], index: 2, kind: output, shape index: {}]
  %s3 = sld [smem:[#allocation0]]
  $region18: #{image_auto_running_mean_and_var.3} parent=0
    _
  %s5 = ssub.s32 1, %s3
  %s6 = scalar_select 0, %s5, %s3
  // Predicated region
  $region2: #{image_auto_running_mean_and_var.3} parent=0 // pred_check
    _
  $region3: #{image_auto_running_mean_and_var.3} parent=0 // pred_check_branch
    %8 = sbr.rel (0) target = $region5
  $region4: #{image_auto_running_mean_and_var.3} parent=0 // pred_region
    _
  $region5: #{image_auto_running_mean_and_var.3} parent=0 // pred_fallthru
    _
  // Predicated region
  $region6: #{image_auto_running_mean_and_var.3} parent=0 // pred_check
    _
  $region7: #{image_auto_running_mean_and_var.3} parent=0 // pred_check_branch
    %10 = sbr.rel (0) target = $region9
  $region8: #{image_auto_running_mean_and_var.3} parent=0 // pred_region
    _
  $region9: #{image_auto_running_mean_and_var.3} parent=0 // pred_fallthru
    _
  %v11 = vld [vmem:[%s1] sm:$0xff]
  %v12 = vld [vmem:[%s0] sm:$0xff]
  %v13 = vld [vmem:[%s0 + $0x8] sm:$0xff]
  %15 = vset.pattern.permute.xlu0 0
  %16 = vperm.xlu0 %15, %v11
  %v17 = vpop.permute.xlu0 %16
  %v19 = vmul.f32 %v12, %v17
  %v20 = vmul.f32 %v13, %v17
  %21 = vset.pattern.permute.xlu0 1
  %22 = vperm.xlu0 %21, %v11
  %v23 = vpop.permute.xlu0 %22
  %v25 = vadd.f32 %v19, %v23
  %v26 = vadd.f32 %v20, %v23
  %27 = vst [vmem:[%s2] sm:$0xff] %v25
  %28 = vst [vmem:[%s2 + $0x8] sm:$0xff] %v26
  // Predicated region
  $region10: #{image_auto_running_mean_and_var.3} parent=0 // pred_check
    _
  $region11: #{image_auto_running_mean_and_var.3} parent=0 // pred_check_branch
    %30 = sbr.rel (0) target = $region13
  $region12: #{image_auto_running_mean_and_var.3} parent=0 // pred_region
    _
  $region13: #{image_auto_running_mean_and_var.3} parent=0 // pred_fallthru
    _
  // Predicated region
  $region14: #{image_auto_running_mean_and_var.3} parent=0 // pred_check
    _
  $region15: #{image_auto_running_mean_and_var.3} parent=0 // pred_check_branch
    %32 = sbr.rel (0) target = $region17
  $region16: #{image_auto_running_mean_and_var.3} parent=0 // pred_region
    _
  $region17: #{image_auto_running_mean_and_var.3} parent=0 // pred_fallthru
    _

// kernel: image_auto_running_mean_and_var.2
$region0: #{image_auto_running_mean_and_var.2}
  #allocation0 [shape = 'u32[]', space=smem, size = 0x4, offset = 0x4, fixed_abs, tag = 'smem constant byte address 0x4 - core index']
  #allocation1 [shape = 'u32[144,128]{1,0:T(1,128)}', space=vmem, size = 0x12000, scoped, tag = 'internal scratch']
  %s0 = inlined_call_operand.vmem [shape: f32[8,256], index: 0, kind: input, shape index: {}]
  %s1 = inlined_call_operand.vmem [shape: f32[8,1], index: 1, kind: input, shape index: {}]
  %s2 = inlined_call_operand.vmem [shape: f32[8,384], index: 2, kind: output, shape index: {}]
  %s3 = sld [smem:[#allocation0]]
  $region22: #{image_auto_running_mean_and_var.2} parent=0
    _
  %s5 = ssub.s32 1, %s3
  %s6 = scalar_select 0, %s5, %s3
  // Predicated region
  $region2: #{image_auto_running_mean_and_var.2} parent=0 // pred_check
    _
  $region3: #{image_auto_running_mean_and_var.2} parent=0 // pred_check_branch
    %8 = sbr.rel (0) target = $region5
  $region4: #{image_auto_running_mean_and_var.2} parent=0 // pred_region
    _
  $region5: #{image_auto_running_mean_and_var.2} parent=0 // pred_fallthru
    _
  // Predicated region
  $region6: #{image_auto_running_mean_and_var.2} parent=0 // pred_check
    _
  $region7: #{image_auto_running_mean_and_var.2} parent=0 // pred_check_branch
    %10 = sbr.rel (0) target = $region9
  $region8: #{image_auto_running_mean_and_var.2} parent=0 // pred_region
    _
  $region9: #{image_auto_running_mean_and_var.2} parent=0 // pred_fallthru
    _
  %p11 = scmp.eq.s32.totalorder 0, 0
  // Predicated region
  $region10: #{image_auto_running_mean_and_var.2} parent=0 // pred_check
    %p12 = pneg %p11
  $region11: #{image_auto_running_mean_and_var.2} parent=0 // pred_check_branch
    %14 = sbr.rel (%p12) target = $region13
  $region12: #{image_auto_running_mean_and_var.2} parent=0 // pred_region
    %15 = vst [vmem:[%s2] sm:$0xff] 0.0
    %16 = vst [vmem:[%s2 + $0x8] sm:$0xff] 0.0
    %17 = vst [vmem:[%s2 + $0x10] sm:$0xff] 0.0
  $region13: #{image_auto_running_mean_and_var.2} parent=0 // pred_fallthru
    _
  %v18 = vld [vmem:[%s1] sm:$0xff]
  %v19 = vld [vmem:[%s0] sm:$0xff]
  %21 = vset.pattern.permute.xlu0 0
  %22 = vperm.xlu0 %21, %v18
  %v23 = vpop.permute.xlu0 %22
  %v25 = vsub.f32 %v19, %v23
  %v26 = vadd.f32 %v19, 0.0
  %v27 = vmul.f32 %v19, %v19
  %v28 = vadd.f32 %v27, 0.0
  %v29 = vmul.f32 %v25, %v25
  %v30 = vadd.f32 %v29, 0.0
  %v31 = vld [vmem:[%s0 + $0x8] sm:$0xff]
  %v32 = vsub.f32 %v31, %v23
  %v33 = vadd.f32 %v26, %v31
  %v34 = vmul.f32 %v31, %v31
  %v35 = vadd.f32 %v28, %v34
  %v36 = vmul.f32 %v32, %v32
  %v37 = vadd.f32 %v30, %v36
  %v38 = vld [vmem:[%s2] sm:$0xff]
  %v39 = vadd.f32 %v38, %v33
  %40 = vst [vmem:[%s2] sm:$0xff] %v39
  %v41 = vld [vmem:[%s2 + $0x8] sm:$0xff]
  %v42 = vadd.f32 %v41, %v35
  %43 = vst [vmem:[%s2 + $0x8] sm:$0xff] %v42
  %v44 = vld [vmem:[%s2 + $0x10] sm:$0xff]
  %v45 = vadd.f32 %v44, %v37
  %46 = vst [vmem:[%s2 + $0x10] sm:$0xff] %v45
  // Predicated region
  $region14: #{image_auto_running_mean_and_var.2} parent=0 // pred_check
    _
  $region15: #{image_auto_running_mean_and_var.2} parent=0 // pred_check_branch
    %48 = sbr.rel (0) target = $region17
  $region16: #{image_auto_running_mean_and_var.2} parent=0 // pred_region
    _
  $region17: #{image_auto_running_mean_and_var.2} parent=0 // pred_fallthru
    _
  // Predicated region
  $region18: #{image_auto_running_mean_and_var.2} parent=0 // pred_check
    _
  $region19: #{image_auto_running_mean_and_var.2} parent=0 // pred_check_branch
    %50 = sbr.rel (0) target = $region21
  $region20: #{image_auto_running_mean_and_var.2} parent=0 // pred_region
    _
  $region21: #{image_auto_running_mean_and_var.2} parent=0 // pred_fallthru
    _

</llo_original>
